<compile_context>
chip_gen: v5e
topology: v5e:2x2
jax: 0.10.0
libtpu: 0.0.40
codegen_flags: <defaults>
</compile_context>

<pallas_src>
import functools

import jax
import jax.numpy as jnp
from jax.experimental import pallas as pl
from jax.experimental.pallas import tpu as pltpu


# ----------------------------- small helpers --------------------------------

def _round_up(n, m):
    return ((n + m - 1) // m) * m


def _num_tensorcores():
    """Best-effort TensorCore count per device (v7x has 2, v5e/v6e have 1)."""
    try:
        dev = jax.devices()[0]
        n = int(getattr(dev, "num_cores", 0) or 0)
        if n >= 1:
            return n
        kind = str(getattr(dev, "device_kind", "")).lower()
        return 2 if "v7" in kind else 1
    except Exception:
        return 1


def _has_bf16_vpu():
    """v6e / v7x have a bf16 VPU; v2-v5 do not (keep the epilogue f32 there)."""
    try:
        kind = str(jax.devices()[0].device_kind).lower()
    except Exception:
        return False
    return not any(t in kind for t in ("v2", "v3", "v4", "v5"))


def _const_spec(shape):
    """Whole-array block, resident across all grid steps (constant index map).
    Single-buffered when pipeline_mode is supported: the block is DMA'd only
    once, so a second pipeline buffer is pure VMEM waste."""
    idx = lambda i: (0, 0)
    try:
        return pl.BlockSpec(shape, idx, pipeline_mode=pl.Buffered(1))
    except (TypeError, AttributeError):
        return pl.BlockSpec(shape, idx)


def _default_tile_b(B, n_cores):
    b8 = _round_up(B, 8)
    if n_cores >= 2:
        # Guarantee at least one tile per TensorCore (grid axis is "parallel"),
        # but keep tiles large enough to fill the MXU; cap for VMEM headroom.
        per_core = _round_up(pl.cdiv(b8, n_cores), 8)
        return int(min(256, max(8, per_core)))
    # Single TensorCore: one grid step for small batches (per-step overhead
    # dominates tiny workloads); 512-row tiles once the batch is large.
    if b8 <= 512:
        return int(b8)
    return 512


# --------------------------------- kernel ------------------------------------

def _ae_kernel(x_ref, w1_ref, b1_ref, w2_ref, b2_ref,
               w3_ref, b3_ref, w4_ref, b4_ref, o_ref,
               *, compute_dtype, epilogue_dtype):
    """Fused 4x (matmul + bias + ReLU) for one batch tile.

    MXU inputs are `compute_dtype` with f32 accumulation; the elementwise
    epilogue (bias add + ReLU) runs in `epilogue_dtype` (bf16 on v6e/v7x,
    f32 on v5e / exact path)."""

    def dense_relu(h, w_ref, b_ref):
        y = jnp.dot(h.astype(compute_dtype), w_ref[...],
                    preferred_element_type=jnp.float32)
        y = y.astype(epilogue_dtype) + b_ref[...]   # (1, out) bias broadcast
        return jnp.maximum(y, 0.0)

    h = x_ref[...]
    h = dense_relu(h, w1_ref, b1_ref)               # encoder hidden
    h = dense_relu(h, w2_ref, b2_ref)               # encoder output (code)
    h = dense_relu(h, w3_ref, b3_ref)               # decoder hidden
    h = dense_relu(h, w4_ref, b4_ref)               # decoder output
    o_ref[...] = h.astype(o_ref.dtype)


# -------------------------------- wrapper ------------------------------------

@functools.partial(jax.jit, static_argnames=("tile_b", "compute_dtype", "out_dtype"))
def ae_forward(x, params, *, tile_b=None, compute_dtype=jnp.bfloat16, out_dtype=None):
    """x: [B, input_shape]; params: dict name -> (W stored [in, out], b [out])."""
    B, d_in = x.shape
    w1, b1 = params["enc_hidden"]
    w2, b2 = params["enc_out"]
    w3, b3 = params["dec_hidden"]
    w4, b4 = params["dec_out"]
    d_hid = w1.shape[1]

    out_dtype = x.dtype if out_dtype is None else out_dtype
    n_cores = _num_tensorcores()
    if compute_dtype == jnp.float32 or not _has_bf16_vpu():
        epilogue_dtype = jnp.float32
    else:
        epilogue_dtype = compute_dtype

    if tile_b is None:
        tile_b = _default_tile_b(B, n_cores)
    tile_b = _round_up(int(tile_b), 8)              # respect the (8, 128) rule

    # Layout prep (all no-ops under jit when params were pre-prepared and dims
    # are already lane-aligned).
    w1 = w1.astype(compute_dtype); w2 = w2.astype(compute_dtype)
    w3 = w3.astype(compute_dtype); w4 = w4.astype(compute_dtype)
    b1 = b1.reshape(1, -1).astype(epilogue_dtype)
    b2 = b2.reshape(1, -1).astype(epilogue_dtype)
    b3 = b3.reshape(1, -1).astype(epilogue_dtype)
    b4 = b4.reshape(1, -1).astype(epilogue_dtype)

    # Stream activations in compute_dtype (halves x DMA bytes on the bf16 path).
    x_in = x.astype(compute_dtype)

    # Lane-dense feature dims: zero-pad to multiples of 128 only if needed.
    # Zero padding is exact through matmul + bias(0) + ReLU and is sliced off.
    d_in_p, d_hid_p = _round_up(d_in, 128), _round_up(d_hid, 128)
    if d_in_p != d_in or d_hid_p != d_hid:
        pi, ph = d_in_p - d_in, d_hid_p - d_hid
        x_in = jnp.pad(x_in, ((0, 0), (0, pi)))
        w1 = jnp.pad(w1, ((0, pi), (0, ph))); b1 = jnp.pad(b1, ((0, 0), (0, ph)))
        w2 = jnp.pad(w2, ((0, ph), (0, ph))); b2 = jnp.pad(b2, ((0, 0), (0, ph)))
        w3 = jnp.pad(w3, ((0, ph), (0, ph))); b3 = jnp.pad(b3, ((0, 0), (0, ph)))
        w4 = jnp.pad(w4, ((0, ph), (0, pi))); b4 = jnp.pad(b4, ((0, 0), (0, pi)))

    # Pad the batch only when it does not divide into the tile.
    n_tiles = pl.cdiv(B, tile_b)
    B_pad = n_tiles * tile_b
    if B_pad != B:
        x_in = jnp.pad(x_in, ((0, B_pad - B), (0, 0)))

    # Explicit VMEM budget (never below the default scoped limit, capped at 64MiB
    # for v7x's smaller physical VMEM).
    csz = jnp.dtype(compute_dtype).itemsize
    esz = jnp.dtype(epilogue_dtype).itemsize
    osz = jnp.dtype(out_dtype).itemsize
    w_bytes = (2 * d_in_p * d_hid_p + 2 * d_hid_p * d_hid_p) * csz   # single-buffered weights
    b_bytes = (3 * d_hid_p + d_in_p) * esz
    io_bytes = 2 * tile_b * d_in_p * (csz + osz)                     # double-buffered x / out
    scratch = 4 * tile_b * max(d_in_p, d_hid_p) * 4                  # f32 intermediates headroom
    need = w_bytes + b_bytes + io_bytes + scratch
    vmem_limit = int(min(64 << 20, max(32 << 20, 2 * need)))

    kernel = functools.partial(_ae_kernel, compute_dtype=compute_dtype,
                               epilogue_dtype=epilogue_dtype)

    out = pl.pallas_call(
        kernel,
        out_shape=jax.ShapeDtypeStruct((B_pad, d_in_p), out_dtype),
        grid_spec=pltpu.PrefetchScalarGridSpec(
            num_scalar_prefetch=0,
            grid=(n_tiles,),
            in_specs=[
                pl.BlockSpec((tile_b, d_in_p), lambda i: (i, 0)),   # x tile
                _const_spec((d_in_p, d_hid_p)),                     # W1
                _const_spec((1, d_hid_p)),                          # b1
                _const_spec((d_hid_p, d_hid_p)),                    # W2
                _const_spec((1, d_hid_p)),                          # b2
                _const_spec((d_hid_p, d_hid_p)),                    # W3
                _const_spec((1, d_hid_p)),                          # b3
                _const_spec((d_hid_p, d_in_p)),                     # W4
                _const_spec((1, d_in_p)),                           # b4
            ],
            out_specs=pl.BlockSpec((tile_b, d_in_p), lambda i: (i, 0)),
        ),
        compiler_params=pltpu.CompilerParams(
            dimension_semantics=("parallel",),      # batch tiles are independent
            vmem_limit_bytes=vmem_limit,
        ),
    )(x_in, w1, b1, w2, b2, w3, b3, w4, b4)

    if B_pad != B:
        out = out[:B]
    if d_in_p != d_in:
        out = out[:, :d_in]
    return out


# ------------------------- params & reference --------------------------------

def init_params(key, input_shape, output_shape):
    """Xavier-uniform (gain=sqrt(2), matching calculate_gain('relu')) weights
    stored as [in, out]; biases ~ U(-1/sqrt(in), 1/sqrt(in)) like torch.nn.Linear."""
    gain = jnp.sqrt(2.0)

    def linear(key, fan_in, fan_out):
        kw, kb = jax.random.split(key)
        limit = gain * jnp.sqrt(6.0 / (fan_in + fan_out))
        w = jax.random.uniform(kw, (fan_in, fan_out), jnp.float32, -limit, limit)
        blim = 1.0 / jnp.sqrt(fan_in)
        b = jax.random.uniform(kb, (fan_out,), jnp.float32, -blim, blim)
        return w, b

    k1, k2, k3, k4 = jax.random.split(key, 4)
    return {
        "enc_hidden": linear(k1, input_shape, output_shape),
        "enc_out":    linear(k2, output_shape, output_shape),
        "dec_hidden": linear(k3, output_shape, output_shape),
        "dec_out":    linear(k4, output_shape, input_shape),
    }


def prepare_params(params, compute_dtype=jnp.bfloat16):
    """Pre-cast weights to the MXU compute dtype and pre-shape biases to (1, out)
    once, so repeated calls to ae_forward do no per-call weight cast pass."""
    return {name: (jnp.asarray(w, compute_dtype),
                   jnp.asarray(b, jnp.float32).reshape(1, -1))
            for name, (w, b) in params.items()}


def ae_forward_ref(x, params):
    """Pure-JAX f32 reference for correctness check."""
    h = x
    for name in ("enc_hidden", "enc_out", "dec_hidden", "dec_out"):
        w, b = params[name]
        h = jnp.maximum(h @ w + b.reshape(-1), 0.0)
    return h


# ---------------------------------- main --------------------------------------

if __name__ == "__main__":
    key = jax.random.PRNGKey(0)
    k_param, k_x = jax.random.split(key)

    # B intentionally NOT a multiple of 128 to exercise the tiling logic.
    B, INPUT_SHAPE, OUTPUT_SHAPE = 200, 256, 128
    params = init_params(k_param, INPUT_SHAPE, OUTPUT_SHAPE)
    x = jax.random.normal(k_x, (B, INPUT_SHAPE), jnp.float32)

    ref = ae_forward_ref(x, params)

    # Exact f32 path: tight tolerance.
    out_f32 = jax.block_until_ready(ae_forward(x, params, compute_dtype=jnp.float32))
    assert out_f32.shape == (B, INPUT_SHAPE)
    assert jnp.allclose(out_f32, ref, atol=1e-4, rtol=1e-4), "f32 path mismatch vs reference"

    # Fast path: bf16 streamed activations + pre-cast bf16 weights, f32 MXU accumulation.
    params_fast = prepare_params(params, jnp.bfloat16)
    out_bf16 = jax.block_until_ready(ae_forward(x, params_fast))
    assert out_bf16.shape == (B, INPUT_SHAPE)
    rel_err = jnp.max(jnp.abs(out_bf16.astype(jnp.float32) - ref)) / (jnp.max(jnp.abs(ref)) + 1e-6)
    assert rel_err < 5e-2, f"bf16 path mismatch vs reference (rel_err={rel_err})"

    print("KERNEL_OK")
</pallas_src>

<mosaic_0001>
module attributes {stable_mosaic.version = 11 : i64} {
  func.func @_ae_kernel(%arg0: i32, %arg1: memref<200x256xf32, #tpu.memory_space<vmem>>, %arg2: memref<256x128xf32, #tpu.memory_space<vmem>>, %arg3: memref<1x128xf32, #tpu.memory_space<vmem>>, %arg4: memref<128x128xf32, #tpu.memory_space<vmem>>, %arg5: memref<1x128xf32, #tpu.memory_space<vmem>>, %arg6: memref<128x128xf32, #tpu.memory_space<vmem>>, %arg7: memref<1x128xf32, #tpu.memory_space<vmem>>, %arg8: memref<128x256xf32, #tpu.memory_space<vmem>>, %arg9: memref<1x256xf32, #tpu.memory_space<vmem>>, %arg10: memref<200x256xf32, #tpu.memory_space<vmem>>) attributes {dimension_semantics = [#tpu.dimension_semantics<parallel>], iteration_bounds = array<i64: 1>, scalar_prefetch = 0 : i64, scratch_operands = 0 : i64, tpu.core_type = #tpu.core_type<tc>, window_params = [{transform_indices = @transform_0, window_bounds = array<i64: 200, 256>}, {pipeline_mode = #tpu.pipeline_mode<synchronous>, transform_indices = @transform_1, window_bounds = array<i64: 256, 128>}, {pipeline_mode = #tpu.pipeline_mode<synchronous>, transform_indices = @transform_2, window_bounds = array<i64: 1, 128>}, {pipeline_mode = #tpu.pipeline_mode<synchronous>, transform_indices = @transform_3, window_bounds = array<i64: 128, 128>}, {pipeline_mode = #tpu.pipeline_mode<synchronous>, transform_indices = @transform_4, window_bounds = array<i64: 1, 128>}, {pipeline_mode = #tpu.pipeline_mode<synchronous>, transform_indices = @transform_5, window_bounds = array<i64: 128, 128>}, {pipeline_mode = #tpu.pipeline_mode<synchronous>, transform_indices = @transform_6, window_bounds = array<i64: 1, 128>}, {pipeline_mode = #tpu.pipeline_mode<synchronous>, transform_indices = @transform_7, window_bounds = array<i64: 128, 256>}, {pipeline_mode = #tpu.pipeline_mode<synchronous>, transform_indices = @transform_8, window_bounds = array<i64: 1, 256>}, {transform_indices = @transform_9, window_bounds = array<i64: 200, 256>}]} {
    %c0 = arith.constant 0 : index
    %c0_0 = arith.constant 0 : index
    %0 = vector.load %arg1[%c0, %c0_0] : memref<200x256xf32, #tpu.memory_space<vmem>>, vector<200x256xf32>
    %c0_1 = arith.constant 0 : index
    %c0_2 = arith.constant 0 : index
    %1 = vector.load %arg2[%c0_1, %c0_2] : memref<256x128xf32, #tpu.memory_space<vmem>>, vector<256x128xf32>
    %cst = arith.constant dense<0.000000e+00> : vector<200x128xf32>
    %2 = tpu.matmul %0, %1, %cst {dimension_numbers = #tpu.dot_dimension_numbers<[1], [0], [0], [1], [0, 0, 1, 1], [], []>} : vector<200x256xf32>, vector<256x128xf32>, vector<200x128xf32> -> vector<200x128xf32>
    %c0_3 = arith.constant 0 : index
    %c0_4 = arith.constant 0 : index
    %3 = vector.load %arg3[%c0_3, %c0_4] : memref<1x128xf32, #tpu.memory_space<vmem>>, vector<1x128xf32>
    %4 = vector.broadcast %3 : vector<1x128xf32> to vector<200x128xf32>
    %5 = arith.addf %2, %4 : vector<200x128xf32>
    %cst_5 = arith.constant 0.000000e+00 : f32
    %6 = vector.broadcast %cst_5 : f32 to vector<200x128xf32>
    %7 = arith.maximumf %5, %6 : vector<200x128xf32>
    %c0_6 = arith.constant 0 : index
    %c0_7 = arith.constant 0 : index
    %8 = vector.load %arg4[%c0_6, %c0_7] : memref<128x128xf32, #tpu.memory_space<vmem>>, vector<128x128xf32>
    %cst_8 = arith.constant dense<0.000000e+00> : vector<200x128xf32>
    %9 = tpu.matmul %7, %8, %cst_8 {dimension_numbers = #tpu.dot_dimension_numbers<[1], [0], [0], [1], [0, 0, 1, 1], [], []>} : vector<200x128xf32>, vector<128x128xf32>, vector<200x128xf32> -> vector<200x128xf32>
    %c0_9 = arith.constant 0 : index
    %c0_10 = arith.constant 0 : index
    %10 = vector.load %arg5[%c0_9, %c0_10] : memref<1x128xf32, #tpu.memory_space<vmem>>, vector<1x128xf32>
    %11 = vector.broadcast %10 : vector<1x128xf32> to vector<200x128xf32>
    %12 = arith.addf %9, %11 : vector<200x128xf32>
    %cst_11 = arith.constant 0.000000e+00 : f32
    %13 = vector.broadcast %cst_11 : f32 to vector<200x128xf32>
    %14 = arith.maximumf %12, %13 : vector<200x128xf32>
    %c0_12 = arith.constant 0 : index
    %c0_13 = arith.constant 0 : index
    %15 = vector.load %arg6[%c0_12, %c0_13] : memref<128x128xf32, #tpu.memory_space<vmem>>, vector<128x128xf32>
    %cst_14 = arith.constant dense<0.000000e+00> : vector<200x128xf32>
    %16 = tpu.matmul %14, %15, %cst_14 {dimension_numbers = #tpu.dot_dimension_numbers<[1], [0], [0], [1], [0, 0, 1, 1], [], []>} : vector<200x128xf32>, vector<128x128xf32>, vector<200x128xf32> -> vector<200x128xf32>
    %c0_15 = arith.constant 0 : index
    %c0_16 = arith.constant 0 : index
    %17 = vector.load %arg7[%c0_15, %c0_16] : memref<1x128xf32, #tpu.memory_space<vmem>>, vector<1x128xf32>
    %18 = vector.broadcast %17 : vector<1x128xf32> to vector<200x128xf32>
    %19 = arith.addf %16, %18 : vector<200x128xf32>
    %cst_17 = arith.constant 0.000000e+00 : f32
    %20 = vector.broadcast %cst_17 : f32 to vector<200x128xf32>
    %21 = arith.maximumf %19, %20 : vector<200x128xf32>
    %c0_18 = arith.constant 0 : index
    %c0_19 = arith.constant 0 : index
    %22 = vector.load %arg8[%c0_18, %c0_19] : memref<128x256xf32, #tpu.memory_space<vmem>>, vector<128x256xf32>
    %cst_20 = arith.constant dense<0.000000e+00> : vector<200x256xf32>
    %23 = tpu.matmul %21, %22, %cst_20 {dimension_numbers = #tpu.dot_dimension_numbers<[1], [0], [0], [1], [0, 0, 1, 1], [], []>} : vector<200x128xf32>, vector<128x256xf32>, vector<200x256xf32> -> vector<200x256xf32>
    %c0_21 = arith.constant 0 : index
    %c0_22 = arith.constant 0 : index
    %24 = vector.load %arg9[%c0_21, %c0_22] : memref<1x256xf32, #tpu.memory_space<vmem>>, vector<1x256xf32>
    %25 = vector.broadcast %24 : vector<1x256xf32> to vector<200x256xf32>
    %26 = arith.addf %23, %25 : vector<200x256xf32>
    %cst_23 = arith.constant 0.000000e+00 : f32
    %27 = vector.broadcast %cst_23 : f32 to vector<200x256xf32>
    %28 = arith.maximumf %26, %27 : vector<200x256xf32>
    %c0_24 = arith.constant 0 : index
    %c0_25 = arith.constant 0 : index
    %29 = vector.load %arg10[%c0_24, %c0_25] : memref<200x256xf32, #tpu.memory_space<vmem>>, vector<200x256xf32>
    tpu.vector_store %arg10[%c0_24, %c0_25], %28 {strides = array<i32>} : memref<200x256xf32, #tpu.memory_space<vmem>>, vector<200x256xf32>,
    return
  }
  func.func @transform_0(%arg0: i32) -> (i32, i32) {
    %c0_i32 = arith.constant 0 : i32
    %c0_i32_0 = arith.constant 0 : i32
    return %arg0, %c0_i32 : i32, i32
  }
  func.func @transform_1(%arg0: i32) -> (i32, i32) {
    %c0_i32 = arith.constant 0 : i32
    %c0_i32_0 = arith.constant 0 : i32
    %c0_i32_1 = arith.constant 0 : i32
    return %c0_i32, %c0_i32_0 : i32, i32
  }
  func.func @transform_2(%arg0: i32) -> (i32, i32) {
    %c0_i32 = arith.constant 0 : i32
    %c0_i32_0 = arith.constant 0 : i32
    %c0_i32_1 = arith.constant 0 : i32
    return %c0_i32, %c0_i32_0 : i32, i32
  }
  func.func @transform_3(%arg0: i32) -> (i32, i32) {
    %c0_i32 = arith.constant 0 : i32
    %c0_i32_0 = arith.constant 0 : i32
    %c0_i32_1 = arith.constant 0 : i32
    return %c0_i32, %c0_i32_0 : i32, i32
  }
  func.func @transform_4(%arg0: i32) -> (i32, i32) {
    %c0_i32 = arith.constant 0 : i32
    %c0_i32_0 = arith.constant 0 : i32
    %c0_i32_1 = arith.constant 0 : i32
    return %c0_i32, %c0_i32_0 : i32, i32
  }
  func.func @transform_5(%arg0: i32) -> (i32, i32) {
    %c0_i32 = arith.constant 0 : i32
    %c0_i32_0 = arith.constant 0 : i32
    %c0_i32_1 = arith.constant 0 : i32
    return %c0_i32, %c0_i32_0 : i32, i32
  }
  func.func @transform_6(%arg0: i32) -> (i32, i32) {
    %c0_i32 = arith.constant 0 : i32
    %c0_i32_0 = arith.constant 0 : i32
    %c0_i32_1 = arith.constant 0 : i32
    return %c0_i32, %c0_i32_0 : i32, i32
  }
  func.func @transform_7(%arg0: i32) -> (i32, i32) {
    %c0_i32 = arith.constant 0 : i32
    %c0_i32_0 = arith.constant 0 : i32
    %c0_i32_1 = arith.constant 0 : i32
    return %c0_i32, %c0_i32_0 : i32, i32
  }
  func.func @transform_8(%arg0: i32) -> (i32, i32) {
    %c0_i32 = arith.constant 0 : i32
    %c0_i32_0 = arith.constant 0 : i32
    %c0_i32_1 = arith.constant 0 : i32
    return %c0_i32, %c0_i32_0 : i32, i32
  }
  func.func @transform_9(%arg0: i32) -> (i32, i32) {
    %c0_i32 = arith.constant 0 : i32
    %c0_i32_0 = arith.constant 0 : i32
    return %arg0, %c0_i32 : i32, i32
  }
}

</mosaic_0001>

<llo_original>
// kernel: ae_forward.1
$region0: #{ae_forward.1}
  #allocation0 [shape = 'u32[]', space=smem, size = 0x4, offset = 0x4, fixed_abs, tag = 'smem constant byte address 0x4 - core index']
  #allocation1 [shape = 'u32[72,128]{1,0:T(1,128)}', space=vmem, size = 0x9000, scoped, tag = 'internal scratch']
  %s0 = inlined_call_operand.hbm [shape: f32[200,256], index: 0, kind: input, shape index: {}]
  %s1 = inlined_call_operand.hbm [shape: f32[256,128], index: 1, kind: input, shape index: {}]
  %s2 = inlined_call_operand.vmem [shape: f32[1,128], index: 2, kind: input, shape index: {}]
  %s3 = inlined_call_operand.hbm [shape: f32[128,128], index: 3, kind: input, shape index: {}]
  %s4 = inlined_call_operand.vmem [shape: f32[1,128], index: 4, kind: input, shape index: {}]
  %s5 = inlined_call_operand.hbm [shape: f32[128,128], index: 5, kind: input, shape index: {}]
  %s6 = inlined_call_operand.vmem [shape: f32[1,128], index: 6, kind: input, shape index: {}]
  %s7 = inlined_call_operand.hbm [shape: f32[128,256], index: 7, kind: input, shape index: {}]
  %s8 = inlined_call_operand.vmem [shape: f32[1,256], index: 8, kind: input, shape index: {}]
  %s9 = inlined_call_operand.hbm [shape: f32[200,256], index: 9, kind: output, shape index: {}]
  %s10 = sld [smem:[#allocation0]]
  $region66: #{ae_forward.1} parent=0
    _
  %s12 = ssub.s32 1, %s10
  %s13 = scalar_select 0, %s12, %s10
  $region1: #{ae_forward.1} parent=0
    #allocation2 [shape = 'u8[204800]{0}', space=vmem, size = 0x32000, scoped, tag = 'input window, operand 0, single buffered']
    #allocation3 [shape = 's32[1]{0}', space=sflag, size = 0x4, scoped, tag = 'scoped memory for ae_forward.1']
    #allocation4 [shape = 's32[1]{0}', space=sflag, size = 0x4, scoped, tag = 'scoped memory for ae_forward.1']
    #allocation5 [shape = 'u8[131072]{0}', space=vmem, size = 0x20000, scoped, tag = 'input window, operand 1, single buffered']
    #allocation6 [shape = 's32[1]{0}', space=sflag, size = 0x4, scoped, tag = 'scoped memory for ae_forward.1']
    #allocation7 [shape = 'u8[65536]{0}', space=vmem, size = 0x10000, scoped, tag = 'input window, operand 3, single buffered']
    #allocation8 [shape = 'u8[65536]{0}', space=vmem, size = 0x10000, scoped, tag = 'input window, operand 5, single buffered']
    #allocation9 [shape = 's32[1]{0}', space=sflag, size = 0x4, scoped, tag = 'scoped memory for ae_forward.1']
    #allocation10 [shape = 'u8[131072]{0}', space=vmem, size = 0x20000, scoped, tag = 'input window, operand 7, single buffered']
    #allocation11 [shape = 'u8[204800]{0}', space=vmem, size = 0x32000, scoped, tag = 'output window, operand 0, single buffered']
    %14 = vsyncpa [#allocation3], 0
    %15 = vsyncpa [#allocation6], 0
    %16 = vsyncpa [#allocation9], 0
    %17 = vsyncpa [#allocation4], 0
    // Predicated region
    $region2: #{ae_forward.1} parent=1 // pred_check
      _
    $region3: #{ae_forward.1} parent=1 // pred_check_branch
      %19 = sbr.rel (0) target = $region5
    $region4: #{ae_forward.1} parent=1 // pred_region
      %21 = vsyncadd [#allocation3], 0
      %s22 = sshll.u32 %s0, 4
      %s23 = int_to_ptr.hbm [resolvable:$true] %s22
      %s24 = sshll.u32 [#allocation2], 4
      %s25 = int_to_ptr.vmem [resolvable:$true] %s24
      %30 = dma.hbm_to_vmem [thread:$0]  %s23, 6400, %s25, [#allocation3], 256, 256, 16
    $region5: #{ae_forward.1} parent=1 // pred_fallthru
      _
    // Predicated region
    $region6: #{ae_forward.1} parent=1 // pred_check
      _
    $region7: #{ae_forward.1} parent=1 // pred_check_branch
      %32 = sbr.rel (0) target = $region9
    $region8: #{ae_forward.1} parent=1 // pred_region
      %34 = vsyncadd [#allocation6], 0
      %s35 = sshll.u32 %s1, 4
      %s36 = int_to_ptr.hbm [resolvable:$true] %s35
      %s37 = sshll.u32 [#allocation5], 4
      %s38 = int_to_ptr.vmem [resolvable:$true] %s37
      %43 = dma.hbm_to_vmem [thread:$0]  %s36, 4096, %s38, [#allocation6], 128, 128, 8
    $region9: #{ae_forward.1} parent=1 // pred_fallthru
      _
    // Predicated region
    $region10: #{ae_forward.1} parent=1 // pred_check
      _
    $region11: #{ae_forward.1} parent=1 // pred_check_branch
      %45 = sbr.rel (0) target = $region13
    $region12: #{ae_forward.1} parent=1 // pred_region
      _
    $region13: #{ae_forward.1} parent=1 // pred_fallthru
      _
    // Predicated region
    $region14: #{ae_forward.1} parent=1 // pred_check
      _
    $region15: #{ae_forward.1} parent=1 // pred_check_branch
      %47 = sbr.rel (0) target = $region17
    $region16: #{ae_forward.1} parent=1 // pred_region
      %49 = vsyncadd [#allocation6], 0
      %s50 = sshll.u32 %s3, 4
      %s51 = int_to_ptr.hbm [resolvable:$true] %s50
      %s52 = sshll.u32 [#allocation7], 4
      %s53 = int_to_ptr.vmem [resolvable:$true] %s52
      %58 = dma.hbm_to_vmem [thread:$0]  %s51, 2048, %s53, [#allocation6], 128, 128, 8
    $region17: #{ae_forward.1} parent=1 // pred_fallthru
      _
    // Predicated region
    $region18: #{ae_forward.1} parent=1 // pred_check
      _
    $region19: #{ae_forward.1} parent=1 // pred_check_branch
      %60 = sbr.rel (0) target = $region21
    $region20: #{ae_forward.1} parent=1 // pred_region
      _
    $region21: #{ae_forward.1} parent=1 // pred_fallthru
      _
    // Predicated region
    $region22: #{ae_forward.1} parent=1 // pred_check
      _
    $region23: #{ae_forward.1} parent=1 // pred_check_branch
      %62 = sbr.rel (0) target = $region25
    $region24: #{ae_forward.1} parent=1 // pred_region
      %64 = vsyncadd [#allocation9], 0
      %s65 = sshll.u32 %s5, 4
      %s66 = int_to_ptr.hbm [resolvable:$true] %s65
      %s67 = sshll.u32 [#allocation8], 4
      %s68 = int_to_ptr.vmem [resolvable:$true] %s67
      %73 = dma.hbm_to_vmem [thread:$0]  %s66, 2048, %s68, [#allocation9], 128, 128, 8
    $region25: #{ae_forward.1} parent=1 // pred_fallthru
      _
    // Predicated region
    $region26: #{ae_forward.1} parent=1 // pred_check
      _
    $region27: #{ae_forward.1} parent=1 // pred_check_branch
      %75 = sbr.rel (0) target = $region29
    $region28: #{ae_forward.1} parent=1 // pred_region
      _
    $region29: #{ae_forward.1} parent=1 // pred_fallthru
      _
    // Predicated region
    $region30: #{ae_forward.1} parent=1 // pred_check
      _
    $region31: #{ae_forward.1} parent=1 // pred_check_branch
      %77 = sbr.rel (0) target = $region33
    $region32: #{ae_forward.1} parent=1 // pred_region
      %79 = vsyncadd [#allocation9], 0
      %s80 = sshll.u32 %s7, 4
      %s81 = int_to_ptr.hbm [resolvable:$true] %s80
      %s82 = sshll.u32 [#allocation10], 4
      %s83 = int_to_ptr.vmem [resolvable:$true] %s82
      %88 = dma.hbm_to_vmem [thread:$0]  %s81, 4096, %s83, [#allocation9], 256, 256, 16
    $region33: #{ae_forward.1} parent=1 // pred_fallthru
      _
    // Predicated region
    $region34: #{ae_forward.1} parent=1 // pred_check
      _
    $region35: #{ae_forward.1} parent=1 // pred_check_branch
      %90 = sbr.rel (0) target = $region37
    $region36: #{ae_forward.1} parent=1 // pred_region
      _
    $region37: #{ae_forward.1} parent=1 // pred_fallthru
      _
    // Predicated region
    $region38: #{ae_forward.1} parent=1 // pred_check
      _
    $region39: #{ae_forward.1} parent=1 // pred_check_branch
      %92 = sbr.rel (0) target = $region41
    $region40: #{ae_forward.1} parent=1 // pred_region
      %94 = dma.done [#allocation3], 6400
    $region41: #{ae_forward.1} parent=1 // pred_fallthru
      _
    // Predicated region
    $region42: #{ae_forward.1} parent=1 // pred_check
      _
    $region43: #{ae_forward.1} parent=1 // pred_check_branch
      %96 = sbr.rel (0) target = $region45
    $region44: #{ae_forward.1} parent=1 // pred_region
      %98 = dma.done [#allocation6], 4096
    $region45: #{ae_forward.1} parent=1 // pred_fallthru
      _
    // Predicated region
    $region46: #{ae_forward.1} parent=1 // pred_check
      _
    $region47: #{ae_forward.1} parent=1 // pred_check_branch
      %100 = sbr.rel (0) target = $region49
    $region48: #{ae_forward.1} parent=1 // pred_region
      %102 = dma.done [#allocation6], 2048
    $region49: #{ae_forward.1} parent=1 // pred_fallthru
      _
    // Predicated region
    $region50: #{ae_forward.1} parent=1 // pred_check
      _
    $region51: #{ae_forward.1} parent=1 // pred_check_branch
      %104 = sbr.rel (0) target = $region53
    $region52: #{ae_forward.1} parent=1 // pred_region
      %106 = dma.done [#allocation9], 2048
    $region53: #{ae_forward.1} parent=1 // pred_fallthru
      _
    // Predicated region
    $region54: #{ae_forward.1} parent=1 // pred_check
      _
    $region55: #{ae_forward.1} parent=1 // pred_check_branch
      %108 = sbr.rel (0) target = $region57
    $region56: #{ae_forward.1} parent=1 // pred_region
      %110 = dma.done [#allocation9], 4096
    $region57: #{ae_forward.1} parent=1 // pred_fallthru
      _
    %v111 = vld [vmem:[#allocation2] sm:$0xff]
    %v112 = vld [vmem:[#allocation2 + $0x8] sm:$0xff]
    %v113 = vld [vmem:[#allocation2 + $0x10] sm:$0xff]
    %v114 = vld [vmem:[#allocation2 + $0x18] sm:$0xff]
    %v115 = vld [vmem:[#allocation2 + $0x20] sm:$0xff]
    %v116 = vld [vmem:[#allocation2 + $0x28] sm:$0xff]
    %v117 = vld [vmem:[#allocation2 + $0x30] sm:$0xff]
    %v118 = vld [vmem:[#allocation2 + $0x38] sm:$0xff]
    %v119 = vld [vmem:[#allocation2 + $0x40] sm:$0xff]
    %v120 = vld [vmem:[#allocation2 + $0x48] sm:$0xff]
    %v121 = vld [vmem:[#allocation2 + $0x50] sm:$0xff]
    %v122 = vld [vmem:[#allocation2 + $0x58] sm:$0xff]
    %v123 = vld [vmem:[#allocation2 + $0x60] sm:$0xff]
    %v124 = vld [vmem:[#allocation2 + $0x68] sm:$0xff]
    %v125 = vld [vmem:[#allocation2 + $0x70] sm:$0xff]
    %v126 = vld [vmem:[#allocation2 + $0x78] sm:$0xff]
    %v127 = vld [vmem:[#allocation2 + $0x80] sm:$0xff]
    %v128 = vld [vmem:[#allocation2 + $0x88] sm:$0xff]
    %v129 = vld [vmem:[#allocation2 + $0x90] sm:$0xff]
    %v130 = vld [vmem:[#allocation2 + $0x98] sm:$0xff]
    %v131 = vld [vmem:[#allocation2 + $0xa0] sm:$0xff]
    %v132 = vld [vmem:[#allocation2 + $0xa8] sm:$0xff]
    %v133 = vld [vmem:[#allocation2 + $0xb0] sm:$0xff]
    %v134 = vld [vmem:[#allocation2 + $0xb8] sm:$0xff]
    %v135 = vld [vmem:[#allocation2 + $0xc0] sm:$0xff]
    %v136 = vld [vmem:[#allocation2 + $0xc8] sm:$0xff]
    %v137 = vld [vmem:[#allocation2 + $0xd0] sm:$0xff]
    %v138 = vld [vmem:[#allocation2 + $0xd8] sm:$0xff]
    %v139 = vld [vmem:[#allocation2 + $0xe0] sm:$0xff]
    %v140 = vld [vmem:[#allocation2 + $0xe8] sm:$0xff]
    %v141 = vld [vmem:[#allocation2 + $0xf0] sm:$0xff]
    %v142 = vld [vmem:[#allocation2 + $0xf8] sm:$0xff]
    %v143 = vld [vmem:[#allocation2 + $0x100] sm:$0xff]
    %v144 = vld [vmem:[#allocation2 + $0x108] sm:$0xff]
    %v145 = vld [vmem:[#allocation2 + $0x110] sm:$0xff]
    %v146 = vld [vmem:[#allocation2 + $0x118] sm:$0xff]
    %v147 = vld [vmem:[#allocation2 + $0x120] sm:$0xff]
    %v148 = vld [vmem:[#allocation2 + $0x128] sm:$0xff]
    %v149 = vld [vmem:[#allocation2 + $0x130] sm:$0xff]
    %v150 = vld [vmem:[#allocation2 + $0x138] sm:$0xff]
    %v151 = vld [vmem:[#allocation2 + $0x140] sm:$0xff]
    %v152 = vld [vmem:[#allocation2 + $0x148] sm:$0xff]
    %v153 = vld [vmem:[#allocation2 + $0x150] sm:$0xff]
    %v154 = vld [vmem:[#allocation2 + $0x158] sm:$0xff]
    %v155 = vld [vmem:[#allocation2 + $0x160] sm:$0xff]
    %v156 = vld [vmem:[#allocation2 + $0x168] sm:$0xff]
    %v157 = vld [vmem:[#allocation2 + $0x170] sm:$0xff]
    %v158 = vld [vmem:[#allocation2 + $0x178] sm:$0xff]
    %v159 = vld [vmem:[#allocation2 + $0x180] sm:$0xff]
    %v160 = vld [vmem:[#allocation2 + $0x188] sm:$0xff]
    %v161 = vld [vmem:[#allocation5] sm:$0xff]
    %v162 = vld [vmem:[#allocation5 + $0x8] sm:$0xff]
    %v163 = vld [vmem:[#allocation5 + $0x10] sm:$0xff]
    %v164 = vld [vmem:[#allocation5 + $0x18] sm:$0xff]
    %v165 = vld [vmem:[#allocation5 + $0x20] sm:$0xff]
    %v166 = vld [vmem:[#allocation5 + $0x28] sm:$0xff]
    %v167 = vld [vmem:[#allocation5 + $0x30] sm:$0xff]
    %v168 = vld [vmem:[#allocation5 + $0x38] sm:$0xff]
    %v169 = vld [vmem:[#allocation5 + $0x40] sm:$0xff]
    %v170 = vld [vmem:[#allocation5 + $0x48] sm:$0xff]
    %v171 = vld [vmem:[#allocation5 + $0x50] sm:$0xff]
    %v172 = vld [vmem:[#allocation5 + $0x58] sm:$0xff]
    %v173 = vld [vmem:[#allocation5 + $0x60] sm:$0xff]
    %v174 = vld [vmem:[#allocation5 + $0x68] sm:$0xff]
    %v175 = vld [vmem:[#allocation5 + $0x70] sm:$0xff]
    %v176 = vld [vmem:[#allocation5 + $0x78] sm:$0xff]
    %v177 = vld [vmem:[#allocation5 + $0x80] sm:$0xff]
    %v178 = vld [vmem:[#allocation5 + $0x88] sm:$0xff]
    %v179 = vld [vmem:[#allocation5 + $0x90] sm:$0xff]
    %v180 = vld [vmem:[#allocation5 + $0x98] sm:$0xff]
    %v181 = vld [vmem:[#allocation5 + $0xa0] sm:$0xff]
    %v182 = vld [vmem:[#allocation5 + $0xa8] sm:$0xff]
    %v183 = vld [vmem:[#allocation5 + $0xb0] sm:$0xff]
    %v184 = vld [vmem:[#allocation5 + $0xb8] sm:$0xff]
    %v185 = vld [vmem:[#allocation5 + $0xc0] sm:$0xff]
    %v186 = vld [vmem:[#allocation5 + $0xc8] sm:$0xff]
    %v187 = vld [vmem:[#allocation5 + $0xd0] sm:$0xff]
    %v188 = vld [vmem:[#allocation5 + $0xd8] sm:$0xff]
    %v189 = vld [vmem:[#allocation5 + $0xe0] sm:$0xff]
    %v190 = vld [vmem:[#allocation5 + $0xe8] sm:$0xff]
    %v191 = vld [vmem:[#allocation5 + $0xf0] sm:$0xff]
    %v192 = vld [vmem:[#allocation5 + $0xf8] sm:$0xff]
    %v193 = vld [vmem:[%s2] sm:$0x1]
    %v195 = vperm.slane %v193, 0
    %197 = vmatpush.msra.mxu0 %v176
    %198 = vmatpush.msra.mxu0 %v175
    %199 = vmatpush.msra.mxu0 %v174
    %200 = vmatpush.msra.mxu0 %v173
    %201 = vmatpush.msra.mxu0 %v172
    %202 = vmatpush.msra.mxu0 %v171
    %203 = vmatpush.msra.mxu0 %v170
    %204 = vmatpush.msra.mxu0 %v169
    %205 = vmatpush.msra.mxu0 %v168
    %206 = vmatpush.msra.mxu0 %v167
    %207 = vmatpush.msra.mxu0 %v166
    %208 = vmatpush.msra.mxu0 %v165
    %209 = vmatpush.msra.mxu0 %v164
    %210 = vmatpush.msra.mxu0 %v163
    %211 = vmatpush.msra.mxu0 %v162
    %212 = vmatpush.msra.mxu0 %v161
    %213 = vmatmul.f32.gmra.mxu0 %v111
    %v214 = vpop.f32.mrf.mxu0
    %v215 = vadd.f32 %v195, %v214
    %216 = vmatmul.f32.gmra.mxu0 %v113
    %v217 = vpop.f32.mrf.mxu0
    %v218 = vadd.f32 %v195, %v217
    %219 = vmatmul.f32.gmra.mxu0 %v115
    %v220 = vpop.f32.mrf.mxu0
    %v221 = vadd.f32 %v195, %v220
    %222 = vmatmul.f32.gmra.mxu0 %v117
    %v223 = vpop.f32.mrf.mxu0
    %v224 = vadd.f32 %v195, %v223
    %225 = vmatmul.f32.gmra.mxu0 %v119
    %v226 = vpop.f32.mrf.mxu0
    %v227 = vadd.f32 %v195, %v226
    %228 = vmatmul.f32.gmra.mxu0 %v121
    %v229 = vpop.f32.mrf.mxu0
    %v230 = vadd.f32 %v195, %v229
    %231 = vmatmul.f32.gmra.mxu0 %v123
    %v232 = vpop.f32.mrf.mxu0
    %v233 = vadd.f32 %v195, %v232
    %234 = vmatmul.f32.gmra.mxu0 %v125
    %v235 = vpop.f32.mrf.mxu0
    %v236 = vadd.f32 %v195, %v235
    %237 = vmatmul.f32.gmra.mxu0 %v127
    %v238 = vpop.f32.mrf.mxu0
    %v239 = vadd.f32 %v195, %v238
    %240 = vmatmul.f32.gmra.mxu0 %v129
    %v241 = vpop.f32.mrf.mxu0
    %v242 = vadd.f32 %v195, %v241
    %243 = vmatmul.f32.gmra.mxu0 %v131
    %v244 = vpop.f32.mrf.mxu0
    %v245 = vadd.f32 %v195, %v244
    %246 = vmatmul.f32.gmra.mxu0 %v133
    %v247 = vpop.f32.mrf.mxu0
    %v248 = vadd.f32 %v195, %v247
    %249 = vmatmul.f32.gmra.mxu0 %v135
    %v250 = vpop.f32.mrf.mxu0
    %v251 = vadd.f32 %v195, %v250
    %252 = vmatmul.f32.gmra.mxu0 %v137
    %v253 = vpop.f32.mrf.mxu0
    %v254 = vadd.f32 %v195, %v253
    %255 = vmatmul.f32.gmra.mxu0 %v139
    %v256 = vpop.f32.mrf.mxu0
    %v257 = vadd.f32 %v195, %v256
    %258 = vmatmul.f32.gmra.mxu0 %v141
    %v259 = vpop.f32.mrf.mxu0
    %v260 = vadd.f32 %v195, %v259
    %261 = vmatmul.f32.gmra.mxu0 %v143
    %v262 = vpop.f32.mrf.mxu0
    %v263 = vadd.f32 %v195, %v262
    %264 = vmatmul.f32.gmra.mxu0 %v145
    %v265 = vpop.f32.mrf.mxu0
    %v266 = vadd.f32 %v195, %v265
    %267 = vmatmul.f32.gmra.mxu0 %v147
    %v268 = vpop.f32.mrf.mxu0
    %v269 = vadd.f32 %v195, %v268
    %270 = vmatmul.f32.gmra.mxu0 %v149
    %v271 = vpop.f32.mrf.mxu0
    %v272 = vadd.f32 %v195, %v271
    %273 = vmatmul.f32.gmra.mxu0 %v151
    %v274 = vpop.f32.mrf.mxu0
    %v275 = vadd.f32 %v195, %v274
    %276 = vmatmul.f32.gmra.mxu0 %v153
    %v277 = vpop.f32.mrf.mxu0
    %v278 = vadd.f32 %v195, %v277
    %279 = vmatmul.f32.gmra.mxu0 %v155
    %v280 = vpop.f32.mrf.mxu0
    %v281 = vadd.f32 %v195, %v280
    %282 = vmatmul.f32.gmra.mxu0 %v157
    %v283 = vpop.f32.mrf.mxu0
    %v284 = vadd.f32 %v195, %v283
    %285 = vmatmul.f32.gmra.mxu0 %v159
    %v286 = vpop.f32.mrf.mxu0
    %v287 = vadd.f32 %v195, %v286
    %288 = vdwg.mxu0
    %289 = vmatpush.msra.mxu0 %v192
    %290 = vmatpush.msra.mxu0 %v191
    %291 = vmatpush.msra.mxu0 %v190
    %292 = vmatpush.msra.mxu0 %v189
    %293 = vmatpush.msra.mxu0 %v188
    %294 = vmatpush.msra.mxu0 %v187
    %295 = vmatpush.msra.mxu0 %v186
    %296 = vmatpush.msra.mxu0 %v185
    %297 = vmatpush.msra.mxu0 %v184
    %298 = vmatpush.msra.mxu0 %v183
    %299 = vmatpush.msra.mxu0 %v182
    %300 = vmatpush.msra.mxu0 %v181
    %301 = vmatpush.msra.mxu0 %v180
    %302 = vmatpush.msra.mxu0 %v179
    %303 = vmatpush.msra.mxu0 %v178
    %304 = vmatpush.msra.mxu0 %v177
    %305 = vmatmul.f32.gmra.mxu0 %v112
    %v306 = vpop.f32.mrf.mxu0
    %v307 = vadd.f32 %v215, %v306
    %308 = vmatmul.f32.gmra.mxu0 %v114
    %v309 = vpop.f32.mrf.mxu0
    %v310 = vadd.f32 %v218, %v309
    %311 = vmatmul.f32.gmra.mxu0 %v116
    %v312 = vpop.f32.mrf.mxu0
    %v313 = vadd.f32 %v221, %v312
    %314 = vmatmul.f32.gmra.mxu0 %v118
    %v315 = vpop.f32.mrf.mxu0
    %v316 = vadd.f32 %v224, %v315
    %317 = vmatmul.f32.gmra.mxu0 %v120
    %v318 = vpop.f32.mrf.mxu0
    %v319 = vadd.f32 %v227, %v318
    %320 = vmatmul.f32.gmra.mxu0 %v122
    %v321 = vpop.f32.mrf.mxu0
    %v322 = vadd.f32 %v230, %v321
    %323 = vmatmul.f32.gmra.mxu0 %v124
    %v324 = vpop.f32.mrf.mxu0
    %v325 = vadd.f32 %v233, %v324
    %326 = vmatmul.f32.gmra.mxu0 %v126
    %v327 = vpop.f32.mrf.mxu0
    %v328 = vadd.f32 %v236, %v327
    %329 = vmatmul.f32.gmra.mxu0 %v128
    %v330 = vpop.f32.mrf.mxu0
    %v331 = vadd.f32 %v239, %v330
    %332 = vmatmul.f32.gmra.mxu0 %v130
    %v333 = vpop.f32.mrf.mxu0
    %v334 = vadd.f32 %v242, %v333
    %335 = vmatmul.f32.gmra.mxu0 %v132
    %v336 = vpop.f32.mrf.mxu0
    %v337 = vadd.f32 %v245, %v336
    %338 = vmatmul.f32.gmra.mxu0 %v134
    %v339 = vpop.f32.mrf.mxu0
    %v340 = vadd.f32 %v248, %v339
    %341 = vmatmul.f32.gmra.mxu0 %v136
    %v342 = vpop.f32.mrf.mxu0
    %v343 = vadd.f32 %v251, %v342
    %344 = vmatmul.f32.gmra.mxu0 %v138
    %v345 = vpop.f32.mrf.mxu0
    %v346 = vadd.f32 %v254, %v345
    %347 = vmatmul.f32.gmra.mxu0 %v140
    %v348 = vpop.f32.mrf.mxu0
    %v349 = vadd.f32 %v257, %v348
    %350 = vmatmul.f32.gmra.mxu0 %v142
    %v351 = vpop.f32.mrf.mxu0
    %v352 = vadd.f32 %v260, %v351
    %353 = vmatmul.f32.gmra.mxu0 %v144
    %v354 = vpop.f32.mrf.mxu0
    %v355 = vadd.f32 %v263, %v354
    %356 = vmatmul.f32.gmra.mxu0 %v146
    %v357 = vpop.f32.mrf.mxu0
    %v358 = vadd.f32 %v266, %v357
    %359 = vmatmul.f32.gmra.mxu0 %v148
    %v360 = vpop.f32.mrf.mxu0
    %v361 = vadd.f32 %v269, %v360
    %362 = vmatmul.f32.gmra.mxu0 %v150
    %v363 = vpop.f32.mrf.mxu0
    %v364 = vadd.f32 %v272, %v363
    %365 = vmatmul.f32.gmra.mxu0 %v152
    %v366 = vpop.f32.mrf.mxu0
    %v367 = vadd.f32 %v275, %v366
    %368 = vmatmul.f32.gmra.mxu0 %v154
    %v369 = vpop.f32.mrf.mxu0
    %v370 = vadd.f32 %v278, %v369
    %371 = vmatmul.f32.gmra.mxu0 %v156
    %v372 = vpop.f32.mrf.mxu0
    %v373 = vadd.f32 %v281, %v372
    %374 = vmatmul.f32.gmra.mxu0 %v158
    %v375 = vpop.f32.mrf.mxu0
    %v376 = vadd.f32 %v284, %v375
    %377 = vmatmul.f32.gmra.mxu0 %v160
    %v378 = vpop.f32.mrf.mxu0
    %v379 = vadd.f32 %v287, %v378
    %380 = vdwg.mxu0
    %v381 = vmax.f32 %v307, 0.0
    %v382 = vmax.f32 %v310, 0.0
    %v383 = vmax.f32 %v313, 0.0
    %v384 = vmax.f32 %v316, 0.0
    %v385 = vmax.f32 %v319, 0.0
    %v386 = vmax.f32 %v322, 0.0
    %v387 = vmax.f32 %v325, 0.0
    %v388 = vmax.f32 %v328, 0.0
    %v389 = vmax.f32 %v331, 0.0
    %v390 = vmax.f32 %v334, 0.0
    %v391 = vmax.f32 %v337, 0.0
    %v392 = vmax.f32 %v340, 0.0
    %v393 = vmax.f32 %v343, 0.0
    %v394 = vmax.f32 %v346, 0.0
    %v395 = vmax.f32 %v349, 0.0
    %v396 = vmax.f32 %v352, 0.0
    %v397 = vmax.f32 %v355, 0.0
    %v398 = vmax.f32 %v358, 0.0
    %v399 = vmax.f32 %v361, 0.0
    %v400 = vmax.f32 %v364, 0.0
    %v401 = vmax.f32 %v367, 0.0
    %v402 = vmax.f32 %v370, 0.0
    %v403 = vmax.f32 %v373, 0.0
    %v404 = vmax.f32 %v376, 0.0
    %v405 = vmax.f32 %v379, 0.0
    %v406 = vld [vmem:[#allocation7] sm:$0xff]
    %v407 = vld [vmem:[#allocation7 + $0x8] sm:$0xff]
    %v408 = vld [vmem:[#allocation7 + $0x10] sm:$0xff]
    %v409 = vld [vmem:[#allocation7 + $0x18] sm:$0xff]
    %v410 = vld [vmem:[#allocation7 + $0x20] sm:$0xff]
    %v411 = vld [vmem:[#allocation7 + $0x28] sm:$0xff]
    %v412 = vld [vmem:[#allocation7 + $0x30] sm:$0xff]
    %v413 = vld [vmem:[#allocation7 + $0x38] sm:$0xff]
    %v414 = vld [vmem:[#allocation7 + $0x40] sm:$0xff]
    %v415 = vld [vmem:[#allocation7 + $0x48] sm:$0xff]
    %v416 = vld [vmem:[#allocation7 + $0x50] sm:$0xff]
    %v417 = vld [vmem:[#allocation7 + $0x58] sm:$0xff]
    %v418 = vld [vmem:[#allocation7 + $0x60] sm:$0xff]
    %v419 = vld [vmem:[#allocation7 + $0x68] sm:$0xff]
    %v420 = vld [vmem:[#allocation7 + $0x70] sm:$0xff]
    %v421 = vld [vmem:[#allocation7 + $0x78] sm:$0xff]
    %v422 = vld [vmem:[%s4] sm:$0x1]
    %v424 = vperm.slane %v422, 0
    %426 = vmatpush.msra.mxu0 %v421
    %427 = vmatpush.msra.mxu0 %v420
    %428 = vmatpush.msra.mxu0 %v419
    %429 = vmatpush.msra.mxu0 %v418
    %430 = vmatpush.msra.mxu0 %v417
    %431 = vmatpush.msra.mxu0 %v416
    %432 = vmatpush.msra.mxu0 %v415
    %433 = vmatpush.msra.mxu0 %v414
    %434 = vmatpush.msra.mxu0 %v413
    %435 = vmatpush.msra.mxu0 %v412
    %436 = vmatpush.msra.mxu0 %v411
    %437 = vmatpush.msra.mxu0 %v410
    %438 = vmatpush.msra.mxu0 %v409
    %439 = vmatpush.msra.mxu0 %v408
    %440 = vmatpush.msra.mxu0 %v407
    %441 = vmatpush.msra.mxu0 %v406
    %442 = vmatmul.f32.gmra.mxu0 %v381
    %v443 = vpop.f32.mrf.mxu0
    %v444 = vadd.f32 %v424, %v443
    %445 = vmatmul.f32.gmra.mxu0 %v382
    %v446 = vpop.f32.mrf.mxu0
    %v447 = vadd.f32 %v424, %v446
    %448 = vmatmul.f32.gmra.mxu0 %v383
    %v449 = vpop.f32.mrf.mxu0
    %v450 = vadd.f32 %v424, %v449
    %451 = vmatmul.f32.gmra.mxu0 %v384
    %v452 = vpop.f32.mrf.mxu0
    %v453 = vadd.f32 %v424, %v452
    %454 = vmatmul.f32.gmra.mxu0 %v385
    %v455 = vpop.f32.mrf.mxu0
    %v456 = vadd.f32 %v424, %v455
    %457 = vmatmul.f32.gmra.mxu0 %v386
    %v458 = vpop.f32.mrf.mxu0
    %v459 = vadd.f32 %v424, %v458
    %460 = vmatmul.f32.gmra.mxu0 %v387
    %v461 = vpop.f32.mrf.mxu0
    %v462 = vadd.f32 %v424, %v461
    %463 = vmatmul.f32.gmra.mxu0 %v388
    %v464 = vpop.f32.mrf.mxu0
    %v465 = vadd.f32 %v424, %v464
    %466 = vmatmul.f32.gmra.mxu0 %v389
    %v467 = vpop.f32.mrf.mxu0
    %v468 = vadd.f32 %v424, %v467
    %469 = vmatmul.f32.gmra.mxu0 %v390
    %v470 = vpop.f32.mrf.mxu0
    %v471 = vadd.f32 %v424, %v470
    %472 = vmatmul.f32.gmra.mxu0 %v391
    %v473 = vpop.f32.mrf.mxu0
    %v474 = vadd.f32 %v424, %v473
    %475 = vmatmul.f32.gmra.mxu0 %v392
    %v476 = vpop.f32.mrf.mxu0
    %v477 = vadd.f32 %v424, %v476
    %478 = vmatmul.f32.gmra.mxu0 %v393
    %v479 = vpop.f32.mrf.mxu0
    %v480 = vadd.f32 %v424, %v479
    %481 = vmatmul.f32.gmra.mxu0 %v394
    %v482 = vpop.f32.mrf.mxu0
    %v483 = vadd.f32 %v424, %v482
    %484 = vmatmul.f32.gmra.mxu0 %v395
    %v485 = vpop.f32.mrf.mxu0
    %v486 = vadd.f32 %v424, %v485
    %487 = vmatmul.f32.gmra.mxu0 %v396
    %v488 = vpop.f32.mrf.mxu0
    %v489 = vadd.f32 %v424, %v488
    %490 = vmatmul.f32.gmra.mxu0 %v397
    %v491 = vpop.f32.mrf.mxu0
    %v492 = vadd.f32 %v424, %v491
    %493 = vmatmul.f32.gmra.mxu0 %v398
    %v494 = vpop.f32.mrf.mxu0
    %v495 = vadd.f32 %v424, %v494
    %496 = vmatmul.f32.gmra.mxu0 %v399
    %v497 = vpop.f32.mrf.mxu0
    %v498 = vadd.f32 %v424, %v497
    %499 = vmatmul.f32.gmra.mxu0 %v400
    %v500 = vpop.f32.mrf.mxu0
    %v501 = vadd.f32 %v424, %v500
    %502 = vmatmul.f32.gmra.mxu0 %v401
    %v503 = vpop.f32.mrf.mxu0
    %v504 = vadd.f32 %v424, %v503
    %505 = vmatmul.f32.gmra.mxu0 %v402
    %v506 = vpop.f32.mrf.mxu0
    %v507 = vadd.f32 %v424, %v506
    %508 = vmatmul.f32.gmra.mxu0 %v403
    %v509 = vpop.f32.mrf.mxu0
    %v510 = vadd.f32 %v424, %v509
    %511 = vmatmul.f32.gmra.mxu0 %v404
    %v512 = vpop.f32.mrf.mxu0
    %v513 = vadd.f32 %v424, %v512
    %514 = vmatmul.f32.gmra.mxu0 %v405
    %v515 = vpop.f32.mrf.mxu0
    %v516 = vadd.f32 %v424, %v515
    %517 = vdwg.mxu0
    %v518 = vmax.f32 %v444, 0.0
    %v519 = vmax.f32 %v447, 0.0
    %v520 = vmax.f32 %v450, 0.0
    %v521 = vmax.f32 %v453, 0.0
    %v522 = vmax.f32 %v456, 0.0
    %v523 = vmax.f32 %v459, 0.0
    %v524 = vmax.f32 %v462, 0.0
    %v525 = vmax.f32 %v465, 0.0
    %v526 = vmax.f32 %v468, 0.0
    %v527 = vmax.f32 %v471, 0.0
    %v528 = vmax.f32 %v474, 0.0
    %v529 = vmax.f32 %v477, 0.0
    %v530 = vmax.f32 %v480, 0.0
    %v531 = vmax.f32 %v483, 0.0
    %v532 = vmax.f32 %v486, 0.0
    %v533 = vmax.f32 %v489, 0.0
    %v534 = vmax.f32 %v492, 0.0
    %v535 = vmax.f32 %v495, 0.0
    %v536 = vmax.f32 %v498, 0.0
    %v537 = vmax.f32 %v501, 0.0
    %v538 = vmax.f32 %v504, 0.0
    %v539 = vmax.f32 %v507, 0.0
    %v540 = vmax.f32 %v510, 0.0
    %v541 = vmax.f32 %v513, 0.0
    %v542 = vmax.f32 %v516, 0.0
    %v543 = vld [vmem:[#allocation8] sm:$0xff]
    %v544 = vld [vmem:[#allocation8 + $0x8] sm:$0xff]
    %v545 = vld [vmem:[#allocation8 + $0x10] sm:$0xff]
    %v546 = vld [vmem:[#allocation8 + $0x18] sm:$0xff]
    %v547 = vld [vmem:[#allocation8 + $0x20] sm:$0xff]
    %v548 = vld [vmem:[#allocation8 + $0x28] sm:$0xff]
    %v549 = vld [vmem:[#allocation8 + $0x30] sm:$0xff]
    %v550 = vld [vmem:[#allocation8 + $0x38] sm:$0xff]
    %v551 = vld [vmem:[#allocation8 + $0x40] sm:$0xff]
    %v552 = vld [vmem:[#allocation8 + $0x48] sm:$0xff]
    %v553 = vld [vmem:[#allocation8 + $0x50] sm:$0xff]
    %v554 = vld [vmem:[#allocation8 + $0x58] sm:$0xff]
    %v555 = vld [vmem:[#allocation8 + $0x60] sm:$0xff]
    %v556 = vld [vmem:[#allocation8 + $0x68] sm:$0xff]
    %v557 = vld [vmem:[#allocation8 + $0x70] sm:$0xff]
    %v558 = vld [vmem:[#allocation8 + $0x78] sm:$0xff]
    %v559 = vld [vmem:[%s6] sm:$0x1]
    %v561 = vperm.slane %v559, 0
    %563 = vmatpush.msra.mxu0 %v558
    %564 = vmatpush.msra.mxu0 %v557
    %565 = vmatpush.msra.mxu0 %v556
    %566 = vmatpush.msra.mxu0 %v555
    %567 = vmatpush.msra.mxu0 %v554
    %568 = vmatpush.msra.mxu0 %v553
    %569 = vmatpush.msra.mxu0 %v552
    %570 = vmatpush.msra.mxu0 %v551
    %571 = vmatpush.msra.mxu0 %v550
    %572 = vmatpush.msra.mxu0 %v549
    %573 = vmatpush.msra.mxu0 %v548
    %574 = vmatpush.msra.mxu0 %v547
    %575 = vmatpush.msra.mxu0 %v546
    %576 = vmatpush.msra.mxu0 %v545
    %577 = vmatpush.msra.mxu0 %v544
    %578 = vmatpush.msra.mxu0 %v543
    %579 = vmatmul.f32.gmra.mxu0 %v518
    %v580 = vpop.f32.mrf.mxu0
    %v581 = vadd.f32 %v561, %v580
    %582 = vmatmul.f32.gmra.mxu0 %v519
    %v583 = vpop.f32.mrf.mxu0
    %v584 = vadd.f32 %v561, %v583
    %585 = vmatmul.f32.gmra.mxu0 %v520
    %v586 = vpop.f32.mrf.mxu0
    %v587 = vadd.f32 %v561, %v586
    %588 = vmatmul.f32.gmra.mxu0 %v521
    %v589 = vpop.f32.mrf.mxu0
    %v590 = vadd.f32 %v561, %v589
    %591 = vmatmul.f32.gmra.mxu0 %v522
    %v592 = vpop.f32.mrf.mxu0
    %v593 = vadd.f32 %v561, %v592
    %594 = vmatmul.f32.gmra.mxu0 %v523
    %v595 = vpop.f32.mrf.mxu0
    %v596 = vadd.f32 %v561, %v595
    %597 = vmatmul.f32.gmra.mxu0 %v524
    %v598 = vpop.f32.mrf.mxu0
    %v599 = vadd.f32 %v561, %v598
    %600 = vmatmul.f32.gmra.mxu0 %v525
    %v601 = vpop.f32.mrf.mxu0
    %v602 = vadd.f32 %v561, %v601
    %603 = vmatmul.f32.gmra.mxu0 %v526
    %v604 = vpop.f32.mrf.mxu0
    %v605 = vadd.f32 %v561, %v604
    %606 = vmatmul.f32.gmra.mxu0 %v527
    %v607 = vpop.f32.mrf.mxu0
    %v608 = vadd.f32 %v561, %v607
    %609 = vmatmul.f32.gmra.mxu0 %v528
    %v610 = vpop.f32.mrf.mxu0
    %v611 = vadd.f32 %v561, %v610
    %612 = vmatmul.f32.gmra.mxu0 %v529
    %v613 = vpop.f32.mrf.mxu0
    %v614 = vadd.f32 %v561, %v613
    %615 = vmatmul.f32.gmra.mxu0 %v530
    %v616 = vpop.f32.mrf.mxu0
    %v617 = vadd.f32 %v561, %v616
    %618 = vmatmul.f32.gmra.mxu0 %v531
    %v619 = vpop.f32.mrf.mxu0
    %v620 = vadd.f32 %v561, %v619
    %621 = vmatmul.f32.gmra.mxu0 %v532
    %v622 = vpop.f32.mrf.mxu0
    %v623 = vadd.f32 %v561, %v622
    %624 = vmatmul.f32.gmra.mxu0 %v533
    %v625 = vpop.f32.mrf.mxu0
    %v626 = vadd.f32 %v561, %v625
    %627 = vmatmul.f32.gmra.mxu0 %v534
    %v628 = vpop.f32.mrf.mxu0
    %v629 = vadd.f32 %v561, %v628
    %630 = vmatmul.f32.gmra.mxu0 %v535
    %v631 = vpop.f32.mrf.mxu0
    %v632 = vadd.f32 %v561, %v631
    %633 = vmatmul.f32.gmra.mxu0 %v536
    %v634 = vpop.f32.mrf.mxu0
    %v635 = vadd.f32 %v561, %v634
    %636 = vmatmul.f32.gmra.mxu0 %v537
    %v637 = vpop.f32.mrf.mxu0
    %v638 = vadd.f32 %v561, %v637
    %639 = vmatmul.f32.gmra.mxu0 %v538
    %v640 = vpop.f32.mrf.mxu0
    %v641 = vadd.f32 %v561, %v640
    %642 = vmatmul.f32.gmra.mxu0 %v539
    %v643 = vpop.f32.mrf.mxu0
    %v644 = vadd.f32 %v561, %v643
    %645 = vmatmul.f32.gmra.mxu0 %v540
    %v646 = vpop.f32.mrf.mxu0
    %v647 = vadd.f32 %v561, %v646
    %648 = vmatmul.f32.gmra.mxu0 %v541
    %v649 = vpop.f32.mrf.mxu0
    %v650 = vadd.f32 %v561, %v649
    %651 = vmatmul.f32.gmra.mxu0 %v542
    %v652 = vpop.f32.mrf.mxu0
    %v653 = vadd.f32 %v561, %v652
    %654 = vdwg.mxu0
    %v655 = vmax.f32 %v581, 0.0
    %v656 = vmax.f32 %v584, 0.0
    %v657 = vmax.f32 %v587, 0.0
    %v658 = vmax.f32 %v590, 0.0
    %v659 = vmax.f32 %v593, 0.0
    %v660 = vmax.f32 %v596, 0.0
    %v661 = vmax.f32 %v599, 0.0
    %v662 = vmax.f32 %v602, 0.0
    %v663 = vmax.f32 %v605, 0.0
    %v664 = vmax.f32 %v608, 0.0
    %v665 = vmax.f32 %v611, 0.0
    %v666 = vmax.f32 %v614, 0.0
    %v667 = vmax.f32 %v617, 0.0
    %v668 = vmax.f32 %v620, 0.0
    %v669 = vmax.f32 %v623, 0.0
    %v670 = vmax.f32 %v626, 0.0
    %v671 = vmax.f32 %v629, 0.0
    %v672 = vmax.f32 %v632, 0.0
    %v673 = vmax.f32 %v635, 0.0
    %v674 = vmax.f32 %v638, 0.0
    %v675 = vmax.f32 %v641, 0.0
    %v676 = vmax.f32 %v644, 0.0
    %v677 = vmax.f32 %v647, 0.0
    %v678 = vmax.f32 %v650, 0.0
    %v679 = vmax.f32 %v653, 0.0
    %v680 = vld [vmem:[#allocation10] sm:$0xff]
    %v681 = vld [vmem:[#allocation10 + $0x8] sm:$0xff]
    %v682 = vld [vmem:[#allocation10 + $0x10] sm:$0xff]
    %v683 = vld [vmem:[#allocation10 + $0x18] sm:$0xff]
    %v684 = vld [vmem:[#allocation10 + $0x20] sm:$0xff]
    %v685 = vld [vmem:[#allocation10 + $0x28] sm:$0xff]
    %v686 = vld [vmem:[#allocation10 + $0x30] sm:$0xff]
    %v687 = vld [vmem:[#allocation10 + $0x38] sm:$0xff]
    %v688 = vld [vmem:[#allocation10 + $0x40] sm:$0xff]
    %v689 = vld [vmem:[#allocation10 + $0x48] sm:$0xff]
    %v690 = vld [vmem:[#allocation10 + $0x50] sm:$0xff]
    %v691 = vld [vmem:[#allocation10 + $0x58] sm:$0xff]
    %v692 = vld [vmem:[#allocation10 + $0x60] sm:$0xff]
    %v693 = vld [vmem:[#allocation10 + $0x68] sm:$0xff]
    %v694 = vld [vmem:[#allocation10 + $0x70] sm:$0xff]
    %v695 = vld [vmem:[#allocation10 + $0x78] sm:$0xff]
    %v696 = vld [vmem:[#allocation10 + $0x80] sm:$0xff]
    %v697 = vld [vmem:[#allocation10 + $0x88] sm:$0xff]
    %v698 = vld [vmem:[#allocation10 + $0x90] sm:$0xff]
    %v699 = vld [vmem:[#allocation10 + $0x98] sm:$0xff]
    %v700 = vld [vmem:[#allocation10 + $0xa0] sm:$0xff]
    %v701 = vld [vmem:[#allocation10 + $0xa8] sm:$0xff]
    %v702 = vld [vmem:[#allocation10 + $0xb0] sm:$0xff]
    %v703 = vld [vmem:[#allocation10 + $0xb8] sm:$0xff]
    %v704 = vld [vmem:[#allocation10 + $0xc0] sm:$0xff]
    %v705 = vld [vmem:[#allocation10 + $0xc8] sm:$0xff]
    %v706 = vld [vmem:[#allocation10 + $0xd0] sm:$0xff]
    %v707 = vld [vmem:[#allocation10 + $0xd8] sm:$0xff]
    %v708 = vld [vmem:[#allocation10 + $0xe0] sm:$0xff]
    %v709 = vld [vmem:[#allocation10 + $0xe8] sm:$0xff]
    %v710 = vld [vmem:[#allocation10 + $0xf0] sm:$0xff]
    %v711 = vld [vmem:[#allocation10 + $0xf8] sm:$0xff]
    %v712 = vld [vmem:[%s8] sm:$0x3]
    %v714 = vperm.slane %v712, 0
    %v715 = vperm.slane %v712, 1
    %718 = vmatpush.msra.mxu0 %v710
    %719 = vmatpush.msra.mxu0 %v708
    %720 = vmatpush.msra.mxu0 %v706
    %721 = vmatpush.msra.mxu0 %v704
    %722 = vmatpush.msra.mxu0 %v702
    %723 = vmatpush.msra.mxu0 %v700
    %724 = vmatpush.msra.mxu0 %v698
    %725 = vmatpush.msra.mxu0 %v696
    %726 = vmatpush.msra.mxu0 %v694
    %727 = vmatpush.msra.mxu0 %v692
    %728 = vmatpush.msra.mxu0 %v690
    %729 = vmatpush.msra.mxu0 %v688
    %730 = vmatpush.msra.mxu0 %v686
    %731 = vmatpush.msra.mxu0 %v684
    %732 = vmatpush.msra.mxu0 %v682
    %733 = vmatpush.msra.mxu0 %v680
    %734 = vmatmul.f32.gmra.mxu0 %v655
    %v735 = vpop.f32.mrf.mxu0
    %v736 = vadd.f32 %v714, %v735
    %737 = vmatmul.f32.gmra.mxu0 %v656
    %v738 = vpop.f32.mrf.mxu0
    %v739 = vadd.f32 %v714, %v738
    %740 = vmatmul.f32.gmra.mxu0 %v657
    %v741 = vpop.f32.mrf.mxu0
    %v742 = vadd.f32 %v714, %v741
    %743 = vmatmul.f32.gmra.mxu0 %v658
    %v744 = vpop.f32.mrf.mxu0
    %v745 = vadd.f32 %v714, %v744
    %746 = vmatmul.f32.gmra.mxu0 %v659
    %v747 = vpop.f32.mrf.mxu0
    %v748 = vadd.f32 %v714, %v747
    %749 = vmatmul.f32.gmra.mxu0 %v660
    %v750 = vpop.f32.mrf.mxu0
    %v751 = vadd.f32 %v714, %v750
    %752 = vmatmul.f32.gmra.mxu0 %v661
    %v753 = vpop.f32.mrf.mxu0
    %v754 = vadd.f32 %v714, %v753
    %755 = vmatmul.f32.gmra.mxu0 %v662
    %v756 = vpop.f32.mrf.mxu0
    %v757 = vadd.f32 %v714, %v756
    %758 = vmatmul.f32.gmra.mxu0 %v663
    %v759 = vpop.f32.mrf.mxu0
    %v760 = vadd.f32 %v714, %v759
    %761 = vmatmul.f32.gmra.mxu0 %v664
    %v762 = vpop.f32.mrf.mxu0
    %v763 = vadd.f32 %v714, %v762
    %764 = vmatmul.f32.gmra.mxu0 %v665
    %v765 = vpop.f32.mrf.mxu0
    %v766 = vadd.f32 %v714, %v765
    %767 = vmatmul.f32.gmra.mxu0 %v666
    %v768 = vpop.f32.mrf.mxu0
    %v769 = vadd.f32 %v714, %v768
    %770 = vmatmul.f32.gmra.mxu0 %v667
    %v771 = vpop.f32.mrf.mxu0
    %v772 = vadd.f32 %v714, %v771
    %773 = vmatmul.f32.gmra.mxu0 %v668
    %v774 = vpop.f32.mrf.mxu0
    %v775 = vadd.f32 %v714, %v774
    %776 = vmatmul.f32.gmra.mxu0 %v669
    %v777 = vpop.f32.mrf.mxu0
    %v778 = vadd.f32 %v714, %v777
    %779 = vmatmul.f32.gmra.mxu0 %v670
    %v780 = vpop.f32.mrf.mxu0
    %v781 = vadd.f32 %v714, %v780
    %782 = vmatmul.f32.gmra.mxu0 %v671
    %v783 = vpop.f32.mrf.mxu0
    %v784 = vadd.f32 %v714, %v783
    %785 = vmatmul.f32.gmra.mxu0 %v672
    %v786 = vpop.f32.mrf.mxu0
    %v787 = vadd.f32 %v714, %v786
    %788 = vmatmul.f32.gmra.mxu0 %v673
    %v789 = vpop.f32.mrf.mxu0
    %v790 = vadd.f32 %v714, %v789
    %791 = vmatmul.f32.gmra.mxu0 %v674
    %v792 = vpop.f32.mrf.mxu0
    %v793 = vadd.f32 %v714, %v792
    %794 = vmatmul.f32.gmra.mxu0 %v675
    %v795 = vpop.f32.mrf.mxu0
    %v796 = vadd.f32 %v714, %v795
    %797 = vmatmul.f32.gmra.mxu0 %v676
    %v798 = vpop.f32.mrf.mxu0
    %v799 = vadd.f32 %v714, %v798
    %800 = vmatmul.f32.gmra.mxu0 %v677
    %v801 = vpop.f32.mrf.mxu0
    %v802 = vadd.f32 %v714, %v801
    %803 = vmatmul.f32.gmra.mxu0 %v678
    %v804 = vpop.f32.mrf.mxu0
    %v805 = vadd.f32 %v714, %v804
    %806 = vmatmul.f32.gmra.mxu0 %v679
    %v807 = vpop.f32.mrf.mxu0
    %v808 = vadd.f32 %v714, %v807
    %809 = vdwg.mxu0
    %810 = vmatpush.msra.mxu0 %v711
    %811 = vmatpush.msra.mxu0 %v709
    %812 = vmatpush.msra.mxu0 %v707
    %813 = vmatpush.msra.mxu0 %v705
    %814 = vmatpush.msra.mxu0 %v703
    %815 = vmatpush.msra.mxu0 %v701
    %816 = vmatpush.msra.mxu0 %v699
    %817 = vmatpush.msra.mxu0 %v697
    %818 = vmatpush.msra.mxu0 %v695
    %819 = vmatpush.msra.mxu0 %v693
    %820 = vmatpush.msra.mxu0 %v691
    %821 = vmatpush.msra.mxu0 %v689
    %822 = vmatpush.msra.mxu0 %v687
    %823 = vmatpush.msra.mxu0 %v685
    %824 = vmatpush.msra.mxu0 %v683
    %825 = vmatpush.msra.mxu0 %v681
    %826 = vmatmul.f32.gmra.mxu0 %v655
    %v827 = vpop.f32.mrf.mxu0
    %v828 = vadd.f32 %v715, %v827
    %829 = vmatmul.f32.gmra.mxu0 %v656
    %v830 = vpop.f32.mrf.mxu0
    %v831 = vadd.f32 %v715, %v830
    %832 = vmatmul.f32.gmra.mxu0 %v657
    %v833 = vpop.f32.mrf.mxu0
    %v834 = vadd.f32 %v715, %v833
    %835 = vmatmul.f32.gmra.mxu0 %v658
    %v836 = vpop.f32.mrf.mxu0
    %v837 = vadd.f32 %v715, %v836
    %838 = vmatmul.f32.gmra.mxu0 %v659
    %v839 = vpop.f32.mrf.mxu0
    %v840 = vadd.f32 %v715, %v839
    %841 = vmatmul.f32.gmra.mxu0 %v660
    %v842 = vpop.f32.mrf.mxu0
    %v843 = vadd.f32 %v715, %v842
    %844 = vmatmul.f32.gmra.mxu0 %v661
    %v845 = vpop.f32.mrf.mxu0
    %v846 = vadd.f32 %v715, %v845
    %847 = vmatmul.f32.gmra.mxu0 %v662
    %v848 = vpop.f32.mrf.mxu0
    %v849 = vadd.f32 %v715, %v848
    %850 = vmatmul.f32.gmra.mxu0 %v663
    %v851 = vpop.f32.mrf.mxu0
    %v852 = vadd.f32 %v715, %v851
    %853 = vmatmul.f32.gmra.mxu0 %v664
    %v854 = vpop.f32.mrf.mxu0
    %v855 = vadd.f32 %v715, %v854
    %856 = vmatmul.f32.gmra.mxu0 %v665
    %v857 = vpop.f32.mrf.mxu0
    %v858 = vadd.f32 %v715, %v857
    %859 = vmatmul.f32.gmra.mxu0 %v666
    %v860 = vpop.f32.mrf.mxu0
    %v861 = vadd.f32 %v715, %v860
    %862 = vmatmul.f32.gmra.mxu0 %v667
    %v863 = vpop.f32.mrf.mxu0
    %v864 = vadd.f32 %v715, %v863
    %865 = vmatmul.f32.gmra.mxu0 %v668
    %v866 = vpop.f32.mrf.mxu0
    %v867 = vadd.f32 %v715, %v866
    %868 = vmatmul.f32.gmra.mxu0 %v669
    %v869 = vpop.f32.mrf.mxu0
    %v870 = vadd.f32 %v715, %v869
    %871 = vmatmul.f32.gmra.mxu0 %v670
    %v872 = vpop.f32.mrf.mxu0
    %v873 = vadd.f32 %v715, %v872
    %874 = vmatmul.f32.gmra.mxu0 %v671
    %v875 = vpop.f32.mrf.mxu0
    %v876 = vadd.f32 %v715, %v875
    %877 = vmatmul.f32.gmra.mxu0 %v672
    %v878 = vpop.f32.mrf.mxu0
    %v879 = vadd.f32 %v715, %v878
    %880 = vmatmul.f32.gmra.mxu0 %v673
    %v881 = vpop.f32.mrf.mxu0
    %v882 = vadd.f32 %v715, %v881
    %883 = vmatmul.f32.gmra.mxu0 %v674
    %v884 = vpop.f32.mrf.mxu0
    %v885 = vadd.f32 %v715, %v884
    %886 = vmatmul.f32.gmra.mxu0 %v675
    %v887 = vpop.f32.mrf.mxu0
    %v888 = vadd.f32 %v715, %v887
    %889 = vmatmul.f32.gmra.mxu0 %v676
    %v890 = vpop.f32.mrf.mxu0
    %v891 = vadd.f32 %v715, %v890
    %892 = vmatmul.f32.gmra.mxu0 %v677
    %v893 = vpop.f32.mrf.mxu0
    %v894 = vadd.f32 %v715, %v893
    %895 = vmatmul.f32.gmra.mxu0 %v678
    %v896 = vpop.f32.mrf.mxu0
    %v897 = vadd.f32 %v715, %v896
    %898 = vmatmul.f32.gmra.mxu0 %v679
    %v899 = vpop.f32.mrf.mxu0
    %v900 = vadd.f32 %v715, %v899
    %901 = vdwg.mxu0
    %v902 = vmax.f32 %v736, 0.0
    %v903 = vmax.f32 %v828, 0.0
    %v904 = vmax.f32 %v739, 0.0
    %v905 = vmax.f32 %v831, 0.0
    %v906 = vmax.f32 %v742, 0.0
    %v907 = vmax.f32 %v834, 0.0
    %v908 = vmax.f32 %v745, 0.0
    %v909 = vmax.f32 %v837, 0.0
    %v910 = vmax.f32 %v748, 0.0
    %v911 = vmax.f32 %v840, 0.0
    %v912 = vmax.f32 %v751, 0.0
    %v913 = vmax.f32 %v843, 0.0
    %v914 = vmax.f32 %v754, 0.0
    %v915 = vmax.f32 %v846, 0.0
    %v916 = vmax.f32 %v757, 0.0
    %v917 = vmax.f32 %v849, 0.0
    %v918 = vmax.f32 %v760, 0.0
    %v919 = vmax.f32 %v852, 0.0
    %v920 = vmax.f32 %v763, 0.0
    %v921 = vmax.f32 %v855, 0.0
    %v922 = vmax.f32 %v766, 0.0
    %v923 = vmax.f32 %v858, 0.0
    %v924 = vmax.f32 %v769, 0.0
    %v925 = vmax.f32 %v861, 0.0
    %v926 = vmax.f32 %v772, 0.0
    %v927 = vmax.f32 %v864, 0.0
    %v928 = vmax.f32 %v775, 0.0
    %v929 = vmax.f32 %v867, 0.0
    %v930 = vmax.f32 %v778, 0.0
    %v931 = vmax.f32 %v870, 0.0
    %v932 = vmax.f32 %v781, 0.0
    %v933 = vmax.f32 %v873, 0.0
    %v934 = vmax.f32 %v784, 0.0
    %v935 = vmax.f32 %v876, 0.0
    %v936 = vmax.f32 %v787, 0.0
    %v937 = vmax.f32 %v879, 0.0
    %v938 = vmax.f32 %v790, 0.0
    %v939 = vmax.f32 %v882, 0.0
    %v940 = vmax.f32 %v793, 0.0
    %v941 = vmax.f32 %v885, 0.0
    %v942 = vmax.f32 %v796, 0.0
    %v943 = vmax.f32 %v888, 0.0
    %v944 = vmax.f32 %v799, 0.0
    %v945 = vmax.f32 %v891, 0.0
    %v946 = vmax.f32 %v802, 0.0
    %v947 = vmax.f32 %v894, 0.0
    %v948 = vmax.f32 %v805, 0.0
    %v949 = vmax.f32 %v897, 0.0
    %v950 = vmax.f32 %v808, 0.0
    %v951 = vmax.f32 %v900, 0.0
    %952 = vst [vmem:[#allocation11] sm:$0xff] %v902
    %953 = vst [vmem:[#allocation11 + $0x8] sm:$0xff] %v903
    %954 = vst [vmem:[#allocation11 + $0x10] sm:$0xff] %v904
    %955 = vst [vmem:[#allocation11 + $0x18] sm:$0xff] %v905
    %956 = vst [vmem:[#allocation11 + $0x20] sm:$0xff] %v906
    %957 = vst [vmem:[#allocation11 + $0x28] sm:$0xff] %v907
    %958 = vst [vmem:[#allocation11 + $0x30] sm:$0xff] %v908
    %959 = vst [vmem:[#allocation11 + $0x38] sm:$0xff] %v909
    %960 = vst [vmem:[#allocation11 + $0x40] sm:$0xff] %v910
    %961 = vst [vmem:[#allocation11 + $0x48] sm:$0xff] %v911
    %962 = vst [vmem:[#allocation11 + $0x50] sm:$0xff] %v912
    %963 = vst [vmem:[#allocation11 + $0x58] sm:$0xff] %v913
    %964 = vst [vmem:[#allocation11 + $0x60] sm:$0xff] %v914
    %965 = vst [vmem:[#allocation11 + $0x68] sm:$0xff] %v915
    %966 = vst [vmem:[#allocation11 + $0x70] sm:$0xff] %v916
    %967 = vst [vmem:[#allocation11 + $0x78] sm:$0xff] %v917
    %968 = vst [vmem:[#allocation11 + $0x80] sm:$0xff] %v918
    %969 = vst [vmem:[#allocation11 + $0x88] sm:$0xff] %v919
    %970 = vst [vmem:[#allocation11 + $0x90] sm:$0xff] %v920
    %971 = vst [vmem:[#allocation11 + $0x98] sm:$0xff] %v921
    %972 = vst [vmem:[#allocation11 + $0xa0] sm:$0xff] %v922
    %973 = vst [vmem:[#allocation11 + $0xa8] sm:$0xff] %v923
    %974 = vst [vmem:[#allocation11 + $0xb0] sm:$0xff] %v924
    %975 = vst [vmem:[#allocation11 + $0xb8] sm:$0xff] %v925
    %976 = vst [vmem:[#allocation11 + $0xc0] sm:$0xff] %v926
    %977 = vst [vmem:[#allocation11 + $0xc8] sm:$0xff] %v927
    %978 = vst [vmem:[#allocation11 + $0xd0] sm:$0xff] %v928
    %979 = vst [vmem:[#allocation11 + $0xd8] sm:$0xff] %v929
    %980 = vst [vmem:[#allocation11 + $0xe0] sm:$0xff] %v930
    %981 = vst [vmem:[#allocation11 + $0xe8] sm:$0xff] %v931
    %982 = vst [vmem:[#allocation11 + $0xf0] sm:$0xff] %v932
    %983 = vst [vmem:[#allocation11 + $0xf8] sm:$0xff] %v933
    %984 = vst [vmem:[#allocation11 + $0x100] sm:$0xff] %v934
    %985 = vst [vmem:[#allocation11 + $0x108] sm:$0xff] %v935
    %986 = vst [vmem:[#allocation11 + $0x110] sm:$0xff] %v936
    %987 = vst [vmem:[#allocation11 + $0x118] sm:$0xff] %v937
    %988 = vst [vmem:[#allocation11 + $0x120] sm:$0xff] %v938
    %989 = vst [vmem:[#allocation11 + $0x128] sm:$0xff] %v939
    %990 = vst [vmem:[#allocation11 + $0x130] sm:$0xff] %v940
    %991 = vst [vmem:[#allocation11 + $0x138] sm:$0xff] %v941
    %992 = vst [vmem:[#allocation11 + $0x140] sm:$0xff] %v942
    %993 = vst [vmem:[#allocation11 + $0x148] sm:$0xff] %v943
    %994 = vst [vmem:[#allocation11 + $0x150] sm:$0xff] %v944
    %995 = vst [vmem:[#allocation11 + $0x158] sm:$0xff] %v945
    %996 = vst [vmem:[#allocation11 + $0x160] sm:$0xff] %v946
    %997 = vst [vmem:[#allocation11 + $0x168] sm:$0xff] %v947
    %998 = vst [vmem:[#allocation11 + $0x170] sm:$0xff] %v948
    %999 = vst [vmem:[#allocation11 + $0x178] sm:$0xff] %v949
    %1000 = vst [vmem:[#allocation11 + $0x180] sm:$0xff] %v950
    %1001 = vst [vmem:[#allocation11 + $0x188] sm:$0xff] %v951
    // Predicated region
    $region58: #{ae_forward.1} parent=1 // pred_check
      _
    $region59: #{ae_forward.1} parent=1 // pred_check_branch
      %1003 = sbr.rel (0) target = $region61
    $region60: #{ae_forward.1} parent=1 // pred_region
      %1005 = vsyncadd [#allocation4], 0
      %s1006 = sshll.u32 [#allocation11], 4
      %s1007 = int_to_ptr.vmem [resolvable:$true] %s1006
      %s1008 = sshll.u32 %s9, 4
      %s1009 = int_to_ptr.hbm [resolvable:$true] %s1008
      %1014 = dma.vmem_to_hbm [thread:$0]  %s1007, 6400, %s1009, [#allocation4], 256, 256, 16
    $region61: #{ae_forward.1} parent=1 // pred_fallthru
      _
    // Predicated region
    $region62: #{ae_forward.1} parent=1 // pred_check
      _
    $region63: #{ae_forward.1} parent=1 // pred_check_branch
      %1016 = sbr.rel (0) target = $region65
    $region64: #{ae_forward.1} parent=1 // pred_region
      %1018 = dma.done [#allocation4], 6400
    $region65: #{ae_forward.1} parent=1 // pred_fallthru
      _
    %1019 = vsyncpa [#allocation3], 1
    %1020 = vsyncpa [#allocation6], 1
    %1021 = vsyncpa [#allocation9], 1
    %1022 = vsyncpa [#allocation4], 1

</llo_original>
